<compile_context>
chip_gen: v7x
topology: tpu7x:2x2x1
jax: 0.10.0
libtpu: 0.0.40
codegen_flags: <defaults>
</compile_context>

<pallas_src>
import functools

import jax
import jax.numpy as jnp
from jax.experimental import pallas as pl
from jax.experimental.pallas import tpu as pltpu


def _puremf_kernel(users_idx_ref, items_idx_ref,   # scalar-prefetch (SMEM), (B_pad,) int32
                   utab_hbm, itab_hbm,             # full embedding tables, left in HBM
                   out_ref,                        # (1, SUB, 128) f32 output block (VMEM)
                   ue_scr, ie_scr,                 # (tile_rows, D) VMEM gather buffers
                   sem,                            # DMA semaphores, shape (2,)
                   *, tile_rows, n_users, n_items):
    t = pl.program_id(0)
    base = t * tile_rows
    d = ue_scr.shape[-1]
    sub = tile_rows // 128

    # ---- gather: issue one row DMA per (user, item) index; keep them all in
    # flight so the DMA engine pipelines the random-row fetches.
    @pl.loop(0, tile_rows)
    def _issue(r):
        u = jnp.clip(users_idx_ref[base + r], 0, n_users - 1)
        i = jnp.clip(items_idx_ref[base + r], 0, n_items - 1)
        pltpu.make_async_copy(utab_hbm.at[pl.ds(u, 1), :],
                              ue_scr.at[pl.ds(r, 1), :], sem.at[0]).start()
        pltpu.make_async_copy(itab_hbm.at[pl.ds(i, 1), :],
                              ie_scr.at[pl.ds(r, 1), :], sem.at[1]).start()

    # ---- drain: wait for every issued copy (all copies have identical shape,
    # so a dummy descriptor of the same shape carries the right wait amount).
    @pl.loop(0, tile_rows)
    def _drain(r):
        pltpu.make_async_copy(utab_hbm.at[pl.ds(0, 1), :],
                              ue_scr.at[pl.ds(0, 1), :], sem.at[0]).wait()
        pltpu.make_async_copy(itab_hbm.at[pl.ds(0, 1), :],
                              ie_scr.at[pl.ds(0, 1), :], sem.at[1]).wait()

    # ---- compute: elementwise product, reduce over latent dim, sigmoid.
    # Reshape (tile_rows, D) -> (SUB, 128, D) is a leading-dim split (cheap)
    # and yields a lane-dense (SUB, 128) score slab for the store.
    ue = ue_scr[...].astype(jnp.float32)
    ie = ie_scr[...].astype(jnp.float32)
    prod = (ue * ie).reshape(sub, 128, d)
    scores = jnp.sum(prod, axis=-1)                       # (SUB, 128)
    out_ref[...] = jax.nn.sigmoid(scores)[None, :, :].astype(out_ref.dtype)


def puremf_forward(users, items, user_emb, item_emb, *, tile_rows=256):
    """sigmoid(sum(user_emb[users] * item_emb[items], -1)) via one Pallas call."""
    assert tile_rows % 128 == 0
    B = users.shape[0]
    n_users, d = user_emb.shape
    n_items, d2 = item_emb.shape
    assert d == d2

    n_tiles = max(1, -(-B // tile_rows))
    b_pad = n_tiles * tile_rows
    sub = tile_rows // 128

    # Pad index vectors to a whole number of tiles (padding rows use index 0
    # and are sliced off at the end).
    users_p = jnp.zeros((b_pad,), jnp.int32).at[:B].set(users.astype(jnp.int32))
    items_p = jnp.zeros((b_pad,), jnp.int32).at[:B].set(items.astype(jnp.int32))

    kernel = functools.partial(_puremf_kernel, tile_rows=tile_rows,
                               n_users=n_users, n_items=n_items)

    out = pl.pallas_call(
        kernel,
        out_shape=jax.ShapeDtypeStruct((n_tiles, sub, 128), jnp.float32),
        grid_spec=pltpu.PrefetchScalarGridSpec(
            num_scalar_prefetch=2,                 # users_idx, items_idx -> SMEM
            grid=(n_tiles,),
            in_specs=[
                pl.BlockSpec(memory_space=pl.ANY),   # user table stays in HBM
                pl.BlockSpec(memory_space=pl.ANY),   # item table stays in HBM
            ],
            out_specs=pl.BlockSpec((1, sub, 128), lambda t, u_idx, i_idx: (t, 0, 0)),
            scratch_shapes=[
                pltpu.VMEM((tile_rows, d), user_emb.dtype),
                pltpu.VMEM((tile_rows, d), item_emb.dtype),
                pltpu.SemaphoreType.DMA((2,)),
            ],
        ),
        compiler_params=pltpu.CompilerParams(
            dimension_semantics=("parallel",),        # v7x: split tiles over both TCs
            vmem_limit_bytes=32 * 1024 * 1024,        # explicit budget; tiny usage
        ),
    )(users_p, items_p, user_emb, item_emb)

    return out.reshape(-1)[:B]


def puremf_forward_ref(users, items, user_emb, item_emb):
    ue = user_emb[users]
    ie = item_emb[items]
    return jax.nn.sigmoid(jnp.sum(ue * ie, axis=-1))


if __name__ == "__main__":
    # Small synthetic config consistent with PureMF.__init__:
    #   num_users / num_items from the dataset, latent_dim_rec from config.
    num_users, num_items, latent_dim = 32, 48, 32
    batch = 8

    key = jax.random.PRNGKey(0)
    k_u, k_i, k_uid, k_iid = jax.random.split(key, 4)

    # nn.init.normal_(weight, std=0.1) for both embedding tables.
    user_emb = 0.1 * jax.random.normal(k_u, (num_users, latent_dim), jnp.float32)
    item_emb = 0.1 * jax.random.normal(k_i, (num_items, latent_dim), jnp.float32)

    users = jax.random.randint(k_uid, (batch,), 0, num_users, jnp.int32)
    items = jax.random.randint(k_iid, (batch,), 0, num_items, jnp.int32)

    scores = puremf_forward(users, items, user_emb, item_emb)
    jax.block_until_ready(scores)

    expected = puremf_forward_ref(users, items, user_emb, item_emb)
    assert scores.shape == (batch,)
    assert jnp.allclose(scores, expected, atol=1e-5, rtol=1e-5)

    print("KERNEL_OK")
</pallas_src>

<mosaic_0001>
module attributes {stable_mosaic.version = 11 : i64} {
  func.func @_puremf_kernel(%arg0: i32, %arg1: memref<256xi32, #tpu.memory_space<smem>>, %arg2: memref<256xi32, #tpu.memory_space<smem>>, %arg3: memref<32x32xf32, #tpu.memory_space<any>>, %arg4: memref<48x32xf32, #tpu.memory_space<any>>, %arg5: memref<1x2x128xf32, #tpu.memory_space<vmem>>, %arg6: memref<256x32xf32, #tpu.memory_space<vmem>>, %arg7: memref<256x32xf32, #tpu.memory_space<vmem>>, %arg8: memref<2x!tpu.dma_semaphore, #tpu.memory_space<semaphore_mem>>) attributes {dimension_semantics = [#tpu.dimension_semantics<parallel>], iteration_bounds = array<i64: 1>, scalar_prefetch = 2 : i64, scratch_operands = 3 : i64, tpu.core_type = #tpu.core_type<tc>, window_params = [{}, {}, {transform_indices = @transform_2, window_bounds = array<i64: 1, 2, 128>}]} {
    %c256_i32 = arith.constant 256 : i32
    %0 = arith.muli %arg0, %c256_i32 : i32
    %c0_i32 = arith.constant 0 : i32
    %c256_i32_0 = arith.constant 256 : i32
    %1 = arith.addi %c0_i32, %c256_i32_0 : i32
    %c1_i32 = arith.constant 1 : i32
    scf.for %arg9 = %c0_i32 to %1 step %c1_i32  : i32 {
      %c1_i32_12 = arith.constant 1 : i32
      %15 = arith.muli %arg9, %c1_i32_12 : i32
      %c0_i32_13 = arith.constant 0 : i32
      %16 = arith.addi %c0_i32_13, %15 : i32
      %17 = arith.addi %0, %16 : i32
      %18 = arith.index_cast %17 : i32 to index
      %19 = memref.load %arg1[%18] : memref<256xi32, #tpu.memory_space<smem>>
      %c0_i32_14 = arith.constant 0 : i32
      %c31_i32 = arith.constant 31 : i32
      %20 = arith.maxsi %c0_i32_14, %19 : i32
      %21 = arith.minsi %c31_i32, %20 : i32
      %22 = arith.addi %0, %16 : i32
      %23 = arith.index_cast %22 : i32 to index
      %24 = memref.load %arg2[%23] : memref<256xi32, #tpu.memory_space<smem>>
      %c0_i32_15 = arith.constant 0 : i32
      %c47_i32 = arith.constant 47 : i32
      %25 = arith.maxsi %c0_i32_15, %24 : i32
      %26 = arith.minsi %c47_i32, %25 : i32
      %c0_i32_16 = arith.constant 0 : i32
      %c0_i32_17 = arith.constant 0 : i32
      %27 = tpu.memref_slice %arg3[%21, %c0_i32_17] : memref<32x32xf32, #tpu.memory_space<any>> -> memref<1x32xf32, #tpu.memory_space<any>>
      %c0_i32_18 = arith.constant 0 : i32
      %28 = tpu.memref_slice %arg6[%16, %c0_i32_18] : memref<256x32xf32, #tpu.memory_space<vmem>> -> memref<1x32xf32, #tpu.memory_space<vmem>>
      %29 = tpu.memref_slice %arg8[%c0_i32_16] : memref<2x!tpu.dma_semaphore, #tpu.memory_space<semaphore_mem>> -> memref<1x!tpu.dma_semaphore, #tpu.memory_space<semaphore_mem>>
      %30 = tpu.memref_squeeze %29 : memref<1x!tpu.dma_semaphore, #tpu.memory_space<semaphore_mem>> -> memref<!tpu.dma_semaphore, #tpu.memory_space<semaphore_mem>>
      tpu.enqueue_dma source(%27 : memref<1x32xf32, #tpu.memory_space<any>>) target(%28 : memref<1x32xf32, #tpu.memory_space<vmem>>) target_semaphore(%30 : memref<!tpu.dma_semaphore, #tpu.memory_space<semaphore_mem>>)
      %c1_i32_19 = arith.constant 1 : i32
      %c0_i32_20 = arith.constant 0 : i32
      %31 = tpu.memref_slice %arg4[%26, %c0_i32_20] : memref<48x32xf32, #tpu.memory_space<any>> -> memref<1x32xf32, #tpu.memory_space<any>>
      %c0_i32_21 = arith.constant 0 : i32
      %32 = tpu.memref_slice %arg7[%16, %c0_i32_21] : memref<256x32xf32, #tpu.memory_space<vmem>> -> memref<1x32xf32, #tpu.memory_space<vmem>>
      %33 = tpu.memref_slice %arg8[%c1_i32_19] : memref<2x!tpu.dma_semaphore, #tpu.memory_space<semaphore_mem>> -> memref<1x!tpu.dma_semaphore, #tpu.memory_space<semaphore_mem>>
      %34 = tpu.memref_squeeze %33 : memref<1x!tpu.dma_semaphore, #tpu.memory_space<semaphore_mem>> -> memref<!tpu.dma_semaphore, #tpu.memory_space<semaphore_mem>>
      tpu.enqueue_dma source(%31 : memref<1x32xf32, #tpu.memory_space<any>>) target(%32 : memref<1x32xf32, #tpu.memory_space<vmem>>) target_semaphore(%34 : memref<!tpu.dma_semaphore, #tpu.memory_space<semaphore_mem>>)
    }
    %c256_i32_1 = arith.constant 256 : i32
    %c0_i32_2 = arith.constant 0 : i32
    %c256_i32_3 = arith.constant 256 : i32
    %2 = arith.addi %c0_i32_2, %c256_i32_3 : i32
    %c1_i32_4 = arith.constant 1 : i32
    scf.for %arg9 = %c0_i32_2 to %2 step %c1_i32_4  : i32 {
      %c0_i32_12 = arith.constant 0 : i32
      %c0_i32_13 = arith.constant 0 : i32
      %c0_i32_14 = arith.constant 0 : i32
      %15 = tpu.memref_slice %arg3[%c0_i32_13, %c0_i32_14] : memref<32x32xf32, #tpu.memory_space<any>> -> memref<1x32xf32, #tpu.memory_space<any>>
      %c0_i32_15 = arith.constant 0 : i32
      %c0_i32_16 = arith.constant 0 : i32
      %16 = tpu.memref_slice %arg6[%c0_i32_15, %c0_i32_16] : memref<256x32xf32, #tpu.memory_space<vmem>> -> memref<1x32xf32, #tpu.memory_space<vmem>>
      %17 = tpu.memref_slice %arg8[%c0_i32_12] : memref<2x!tpu.dma_semaphore, #tpu.memory_space<semaphore_mem>> -> memref<1x!tpu.dma_semaphore, #tpu.memory_space<semaphore_mem>>
      %18 = tpu.memref_squeeze %17 : memref<1x!tpu.dma_semaphore, #tpu.memory_space<semaphore_mem>> -> memref<!tpu.dma_semaphore, #tpu.memory_space<semaphore_mem>>
      tpu.wait_dma2 semaphore(%18 : memref<!tpu.dma_semaphore, #tpu.memory_space<semaphore_mem>>) src(%15 : memref<1x32xf32, #tpu.memory_space<any>>) dst(%16 : memref<1x32xf32, #tpu.memory_space<vmem>>)
      %c1_i32_17 = arith.constant 1 : i32
      %c0_i32_18 = arith.constant 0 : i32
      %c0_i32_19 = arith.constant 0 : i32
      %19 = tpu.memref_slice %arg4[%c0_i32_18, %c0_i32_19] : memref<48x32xf32, #tpu.memory_space<any>> -> memref<1x32xf32, #tpu.memory_space<any>>
      %c0_i32_20 = arith.constant 0 : i32
      %c0_i32_21 = arith.constant 0 : i32
      %20 = tpu.memref_slice %arg7[%c0_i32_20, %c0_i32_21] : memref<256x32xf32, #tpu.memory_space<vmem>> -> memref<1x32xf32, #tpu.memory_space<vmem>>
      %21 = tpu.memref_slice %arg8[%c1_i32_17] : memref<2x!tpu.dma_semaphore, #tpu.memory_space<semaphore_mem>> -> memref<1x!tpu.dma_semaphore, #tpu.memory_space<semaphore_mem>>
      %22 = tpu.memref_squeeze %21 : memref<1x!tpu.dma_semaphore, #tpu.memory_space<semaphore_mem>> -> memref<!tpu.dma_semaphore, #tpu.memory_space<semaphore_mem>>
      tpu.wait_dma2 semaphore(%22 : memref<!tpu.dma_semaphore, #tpu.memory_space<semaphore_mem>>) src(%19 : memref<1x32xf32, #tpu.memory_space<any>>) dst(%20 : memref<1x32xf32, #tpu.memory_space<vmem>>)
    }
    %c0 = arith.constant 0 : index
    %c0_5 = arith.constant 0 : index
    %3 = vector.load %arg6[%c0, %c0_5] : memref<256x32xf32, #tpu.memory_space<vmem>>, vector<256x32xf32>
    %c0_6 = arith.constant 0 : index
    %c0_7 = arith.constant 0 : index
    %4 = vector.load %arg7[%c0_6, %c0_7] : memref<256x32xf32, #tpu.memory_space<vmem>>, vector<256x32xf32>
    %5 = arith.mulf %3, %4 : vector<256x32xf32>
    %6 = vector.shape_cast %5 : vector<256x32xf32> to vector<2x128x32xf32>
    %cst = arith.constant dense<0.000000e+00> : vector<2x128xf32>
    %7 = vector.multi_reduction <add>, %6, %cst [2] : vector<2x128x32xf32> to vector<2x128xf32>
    %8 = arith.negf %7 : vector<2x128xf32>
    %9 = math.exp %8 : vector<2x128xf32>
    %cst_8 = arith.constant 1.000000e+00 : f32
    %10 = vector.broadcast %cst_8 : f32 to vector<2x128xf32>
    %11 = arith.addf %10, %9 : vector<2x128xf32>
    %12 = arith.divf %10, %11 : vector<2x128xf32>
    %13 = vector.shape_cast %12 : vector<2x128xf32> to vector<1x2x128xf32>
    %c0_9 = arith.constant 0 : index
    %c0_10 = arith.constant 0 : index
    %c0_11 = arith.constant 0 : index
    %14 = vector.load %arg5[%c0_9, %c0_10, %c0_11] : memref<1x2x128xf32, #tpu.memory_space<vmem>>, vector<1x2x128xf32>
    tpu.vector_store %arg5[%c0_9, %c0_10, %c0_11], %13 {strides = array<i32>} : memref<1x2x128xf32, #tpu.memory_space<vmem>>, vector<1x2x128xf32>,
    return
  }
  func.func @transform_2(%arg0: i32, %arg1: memref<256xi32, #tpu.memory_space<smem>>, %arg2: memref<256xi32, #tpu.memory_space<smem>>) -> (i32, i32, i32) {
    %c0_i32 = arith.constant 0 : i32
    %c0_i32_0 = arith.constant 0 : i32
    %c0_i32_1 = arith.constant 0 : i32
    return %arg0, %c0_i32, %c0_i32_0 : i32, i32, i32
  }
}

</mosaic_0001>

<llo_original>
// kernel: tpu_custom_call.1
$region0: #{tpu_custom_call.1}
  #allocation0 [shape = 'u32[]', space=smem, size = 0x4, offset = 0x4, fixed_abs, tag = 'smem constant byte address 0x4 - core index']
  #allocation1 [shape = 'u32[144,128]{1,0:T(1,128)}', space=vmem, size = 0x12000, scoped, tag = 'internal scratch']
  #allocation2 [shape = 'f32[256,32]{1,0:T(8,128)}', space=vmem, size = 0x20000, scoped, tag = 'scratch operand']
  #allocation3 [shape = 'f32[256,32]{1,0:T(8,128)}', space=vmem, size = 0x20000, scoped, tag = 'scratch operand']
  #allocation4 [shape = 's32[2]{0}', space=sflag, size = 0x8, scoped, tag = 'scratch operand']
  #allocation5 [shape = 's32[1]{0}', space=sflag, size = 0x4, scoped, tag = 'scoped memory for tpu_custom_call.1']
  #allocation6 [shape = 'u8[1024]{0}', space=smem, size = 0x400, scoped, tag = 'prefetched SMEM operand 0']
  #allocation7 [shape = 'u8[1024]{0}', space=smem, size = 0x400, scoped, tag = 'prefetched SMEM operand 1']
  #allocation10 [shape = 's32[]', space=sflag, size = 0x4, offset = 0, fixed_abs, tag = 'sflag constant byte address 0x0 - dummy sync flag']
  #allocation11 [shape = 's32[]', space=sflag, size = 0x4, offset = 0, fixed_abs, tag = 'sflag constant byte address 0x0 - dummy sync flag']
  %s0 = inlined_call_operand.vmem [shape: s32[256], index: 0, kind: input, shape index: {}]
  %s1 = inlined_call_operand.vmem [shape: s32[256], index: 1, kind: input, shape index: {}]
  %s2 = inlined_call_operand.vmem [shape: f32[32,32], index: 2, kind: input, shape index: {}]
  %s3 = inlined_call_operand.vmem [shape: f32[48,32], index: 3, kind: input, shape index: {}]
  %s4 = inlined_call_operand.hbm [shape: f32[1,2,128], index: 4, kind: output, shape index: {}]
  %s5 = sld [smem:[#allocation0]]
  $region84: #{tpu_custom_call.1} parent=0
    _
  %s7 = ssub.s32 1, %s5
  %s8 = scalar_select 0, %s7, %s5
  %s9 = sshll.u32 %s0, 4
  %s10 = int_to_ptr.vmem [resolvable:$true] %s9
  %12 = dma.vmem_to_smem %s10, 32, [#allocation6], [#allocation5]
  %s13 = sshll.u32 %s1, 4
  %s14 = int_to_ptr.vmem [resolvable:$true] %s13
  %16 = dma.vmem_to_smem %s14, 32, [#allocation7], [#allocation5]
  %17 = dma.done [#allocation5], 64
  %18 = sfence
  $region1: #{tpu_custom_call.1} parent=0
    #allocation8 [shape = 'u8[1024]{0}', space=vmem, size = 0x400, scoped, tag = 'output window, operand 0, single buffered']
    #allocation9 [shape = 's32[1]{0}', space=sflag, size = 0x4, scoped, tag = 'scoped memory for tpu_custom_call.1']
    %19 = vsyncpa [#allocation9], 0
    %s20 = smul.u32 0, 256
    loop: start=0, step=1, limit=256
    $region2: #{tpu_custom_call.1} parent=1 // loop_pre_header
      _
    $region3: #{tpu_custom_call.1} parent=1 // loop_header
      %s22 = sphi 0, %s26
      %p23 = scmp.ge.s32.totalorder %s22, 256
    $region4: #{tpu_custom_call.1} parent=1 // loop_header_branch
      %25 = sbr.rel (%p23) target = $region8
    $region5: #{tpu_custom_call.1} parent=1 // loop_body
      %s27 = sadd.s32 %s20, %s22
      %s28 = sld [smem:[#allocation6 + %s27]]
      %p29 = scmp.gt.s32.totalorder %s28, 0
      %s30 = scalar_select %p29, %s28, 0
      %p31 = scmp.lt.s32.totalorder %s30, 31
      %s32 = scalar_select %p31, %s30, 31
      %s33 = sld [smem:[#allocation7 + %s27]]
      %p34 = scmp.gt.s32.totalorder %s33, 0
      %s35 = scalar_select %p34, %s33, 0
      %p36 = scmp.lt.s32.totalorder %s35, 47
      %s37 = scalar_select %p36, %s35, 47
      %s38 = scalar_lea.vmem %s2, %s32
      %s39 = scalar_lea.vmem [#allocation2], %s22
      %p41 = scmp.lt.u32.totalorder 1, 8
      %p42 = pneg %p41
      // Predicated region
      $region9: #{tpu_custom_call.1} parent=5 // pred_check
        _
      $region10: #{tpu_custom_call.1} parent=5 // pred_check_branch
        %44 = sbr.rel (%p41) target = $region12
      $region11: #{tpu_custom_call.1} parent=5 // pred_region
        %s59 = sand.u32 1, 7
        %p60 = scmp.eq.s32.totalorder %s59, 0
        %p61 = pneg %p60
        // Predicated region
        $region24: #{tpu_custom_call.1} parent=11 // pred_check
          _
        $region25: #{tpu_custom_call.1} parent=11 // pred_check_branch
          %63 = sbr.rel (%p60) target = $region27
        $region26: #{tpu_custom_call.1} parent=11 // pred_region
          %s64 = sand.u32 1, 7
          %s65 = ssub.s32 1, %s64
          %s66 = scalar_lea.vmem %s38, %s65
          %s67 = ssub.s32 1, %s64
          %s68 = scalar_lea.vmem %s39, %s67 [#allocation2]
          %s69 = sshllo.u32 0, %s64
          loop: start=0, step=1, limit=1
          $region28: #{tpu_custom_call.1} parent=26 // loop_pre_header
            _
          $region29: #{tpu_custom_call.1} parent=26 // loop_header
            %s71 = sphi 0, %s75
            %p72 = scmp.ge.s32.totalorder %s71, 1
            %s76 = sphi %s66, %s66
            %s77 = sphi %s68, %s68
          $region30: #{tpu_custom_call.1} parent=26 // loop_header_branch
            %74 = sbr.rel (%p72) target = $region34
          $region31: #{tpu_custom_call.1} parent=26 // loop_body
            %v78 = vld [vmem:[%s76] sm:%s69]
            %79 = vst [vmem:[%s77] sm:%s69] %v78
          $region32: #{tpu_custom_call.1} parent=26 // loop_footer
            %s75 = sadd.s32 1, %s71
          $region33: #{tpu_custom_call.1} parent=26 // loop_footer_branch
            %70 = sbr.rel target = $region29
          $region34: #{tpu_custom_call.1} parent=26 // loop_exit
            _
        $region27: #{tpu_custom_call.1} parent=11 // pred_fallthru
          _
      $region12: #{tpu_custom_call.1} parent=5 // pred_fallthru
        _
      // Predicated region
      $region13: #{tpu_custom_call.1} parent=5 // pred_check
        %p45 = pneg %p41
      $region14: #{tpu_custom_call.1} parent=5 // pred_check_branch
        %47 = sbr.rel (%p45) target = $region16
      $region15: #{tpu_custom_call.1} parent=5 // pred_region
        %s48 = sshllo.u32 0, 1
        loop: start=0, step=1, limit=1
        $region17: #{tpu_custom_call.1} parent=15 // loop_pre_header
          _
        $region18: #{tpu_custom_call.1} parent=15 // loop_header
          %s50 = sphi 0, %s54
          %p51 = scmp.ge.s32.totalorder %s50, 1
          %s55 = sphi %s38, %s38
          %s56 = sphi %s39, %s39
        $region19: #{tpu_custom_call.1} parent=15 // loop_header_branch
          %53 = sbr.rel (%p51) target = $region23
        $region20: #{tpu_custom_call.1} parent=15 // loop_body
          %v57 = vld [vmem:[%s55] sm:%s48]
          %58 = vst [vmem:[%s56] sm:%s48] %v57
        $region21: #{tpu_custom_call.1} parent=15 // loop_footer
          %s54 = sadd.s32 1, %s50
        $region22: #{tpu_custom_call.1} parent=15 // loop_footer_branch
          %49 = sbr.rel target = $region18
        $region23: #{tpu_custom_call.1} parent=15 // loop_exit
          _
      $region16: #{tpu_custom_call.1} parent=5 // pred_fallthru
        _
      // Predicated region
      $region35: #{tpu_custom_call.1} parent=5 // pred_check
        _
      $region36: #{tpu_custom_call.1} parent=5 // pred_check_branch
        %82 = sbr.rel (0) target = $region38
      $region37: #{tpu_custom_call.1} parent=5 // pred_region
        %83 = vsyncadd [#allocation4], 16
      $region38: #{tpu_custom_call.1} parent=5 // pred_fallthru
        _
      %s84 = scalar_lea.vmem %s3, %s37
      %s85 = scalar_lea.vmem [#allocation3], %s22
      %s86 = scalar_lea.sflag [#allocation4], 1
      %p88 = scmp.lt.u32.totalorder 1, 8
      %p89 = pneg %p88
      // Predicated region
      $region39: #{tpu_custom_call.1} parent=5 // pred_check
        _
      $region40: #{tpu_custom_call.1} parent=5 // pred_check_branch
        %91 = sbr.rel (%p88) target = $region42
      $region41: #{tpu_custom_call.1} parent=5 // pred_region
        %s106 = sand.u32 1, 7
        %p107 = scmp.eq.s32.totalorder %s106, 0
        %p108 = pneg %p107
        // Predicated region
        $region54: #{tpu_custom_call.1} parent=41 // pred_check
          _
        $region55: #{tpu_custom_call.1} parent=41 // pred_check_branch
          %110 = sbr.rel (%p107) target = $region57
        $region56: #{tpu_custom_call.1} parent=41 // pred_region
          %s111 = sand.u32 1, 7
          %s112 = ssub.s32 1, %s111
          %s113 = scalar_lea.vmem %s84, %s112
          %s114 = ssub.s32 1, %s111
          %s115 = scalar_lea.vmem %s85, %s114 [#allocation3]
          %s116 = sshllo.u32 0, %s111
          loop: start=0, step=1, limit=1
          $region58: #{tpu_custom_call.1} parent=56 // loop_pre_header
            _
          $region59: #{tpu_custom_call.1} parent=56 // loop_header
            %s118 = sphi 0, %s122
            %p119 = scmp.ge.s32.totalorder %s118, 1
            %s123 = sphi %s113, %s113
            %s124 = sphi %s115, %s115
          $region60: #{tpu_custom_call.1} parent=56 // loop_header_branch
            %121 = sbr.rel (%p119) target = $region64
          $region61: #{tpu_custom_call.1} parent=56 // loop_body
            %v125 = vld [vmem:[%s123] sm:%s116]
            %126 = vst [vmem:[%s124] sm:%s116] %v125
          $region62: #{tpu_custom_call.1} parent=56 // loop_footer
            %s122 = sadd.s32 1, %s118
          $region63: #{tpu_custom_call.1} parent=56 // loop_footer_branch
            %117 = sbr.rel target = $region59
          $region64: #{tpu_custom_call.1} parent=56 // loop_exit
            _
        $region57: #{tpu_custom_call.1} parent=41 // pred_fallthru
          _
      $region42: #{tpu_custom_call.1} parent=5 // pred_fallthru
        _
      // Predicated region
      $region43: #{tpu_custom_call.1} parent=5 // pred_check
        %p92 = pneg %p88
      $region44: #{tpu_custom_call.1} parent=5 // pred_check_branch
        %94 = sbr.rel (%p92) target = $region46
      $region45: #{tpu_custom_call.1} parent=5 // pred_region
        %s95 = sshllo.u32 0, 1
        loop: start=0, step=1, limit=1
        $region47: #{tpu_custom_call.1} parent=45 // loop_pre_header
          _
        $region48: #{tpu_custom_call.1} parent=45 // loop_header
          %s97 = sphi 0, %s101
          %p98 = scmp.ge.s32.totalorder %s97, 1
          %s102 = sphi %s84, %s84
          %s103 = sphi %s85, %s85
        $region49: #{tpu_custom_call.1} parent=45 // loop_header_branch
          %100 = sbr.rel (%p98) target = $region53
        $region50: #{tpu_custom_call.1} parent=45 // loop_body
          %v104 = vld [vmem:[%s102] sm:%s95]
          %105 = vst [vmem:[%s103] sm:%s95] %v104
        $region51: #{tpu_custom_call.1} parent=45 // loop_footer
          %s101 = sadd.s32 1, %s97
        $region52: #{tpu_custom_call.1} parent=45 // loop_footer_branch
          %96 = sbr.rel target = $region48
        $region53: #{tpu_custom_call.1} parent=45 // loop_exit
          _
      $region46: #{tpu_custom_call.1} parent=5 // pred_fallthru
        _
      // Predicated region
      $region65: #{tpu_custom_call.1} parent=5 // pred_check
        _
      $region66: #{tpu_custom_call.1} parent=5 // pred_check_branch
        %129 = sbr.rel (0) target = $region68
      $region67: #{tpu_custom_call.1} parent=5 // pred_region
        %130 = vsyncadd %s86, 16
      $region68: #{tpu_custom_call.1} parent=5 // pred_fallthru
        _
    $region6: #{tpu_custom_call.1} parent=1 // loop_footer
      %s26 = sadd.s32 1, %s22
    $region7: #{tpu_custom_call.1} parent=1 // loop_footer_branch
      %21 = sbr.rel target = $region3
    $region8: #{tpu_custom_call.1} parent=1 // loop_exit
      _
    loop: start=0, step=1, limit=256
    $region69: #{tpu_custom_call.1} parent=1 // loop_pre_header
      _
    $region70: #{tpu_custom_call.1} parent=1 // loop_header
      %s132 = sphi 0, %s136
      %p133 = scmp.ge.s32.totalorder %s132, 256
    $region71: #{tpu_custom_call.1} parent=1 // loop_header_branch
      %135 = sbr.rel (%p133) target = $region75
    $region72: #{tpu_custom_call.1} parent=1 // loop_body
      %s137 = smul.u32 1, 1
      %s138 = sshll.u32 %s137, 4
      %139 = dma.done [#allocation4], %s138
      %s140 = scalar_lea.sflag [#allocation4], 1
      %s141 = sshll.u32 %s137, 4
      %142 = dma.done %s140, %s141
    $region73: #{tpu_custom_call.1} parent=1 // loop_footer
      %s136 = sadd.s32 1, %s132
    $region74: #{tpu_custom_call.1} parent=1 // loop_footer_branch
      %131 = sbr.rel target = $region70
    $region75: #{tpu_custom_call.1} parent=1 // loop_exit
      _
    %v143 = vld [vmem:[#allocation2] sm:$0xff]
    %v144 = vld [vmem:[#allocation2 + $0x8] sm:$0xff]
    %v145 = vld [vmem:[#allocation2 + $0x10] sm:$0xff]
    %v146 = vld [vmem:[#allocation2 + $0x18] sm:$0xff]
    %v147 = vld [vmem:[#allocation2 + $0x20] sm:$0xff]
    %v148 = vld [vmem:[#allocation2 + $0x28] sm:$0xff]
    %v149 = vld [vmem:[#allocation2 + $0x30] sm:$0xff]
    %v150 = vld [vmem:[#allocation2 + $0x38] sm:$0xff]
    %v151 = vld [vmem:[#allocation2 + $0x40] sm:$0xff]
    %v152 = vld [vmem:[#allocation2 + $0x48] sm:$0xff]
    %v153 = vld [vmem:[#allocation2 + $0x50] sm:$0xff]
    %v154 = vld [vmem:[#allocation2 + $0x58] sm:$0xff]
    %v155 = vld [vmem:[#allocation2 + $0x60] sm:$0xff]
    %v156 = vld [vmem:[#allocation2 + $0x68] sm:$0xff]
    %v157 = vld [vmem:[#allocation2 + $0x70] sm:$0xff]
    %v158 = vld [vmem:[#allocation2 + $0x78] sm:$0xff]
    %v159 = vld [vmem:[#allocation2 + $0x80] sm:$0xff]
    %v160 = vld [vmem:[#allocation2 + $0x88] sm:$0xff]
    %v161 = vld [vmem:[#allocation2 + $0x90] sm:$0xff]
    %v162 = vld [vmem:[#allocation2 + $0x98] sm:$0xff]
    %v163 = vld [vmem:[#allocation2 + $0xa0] sm:$0xff]
    %v164 = vld [vmem:[#allocation2 + $0xa8] sm:$0xff]
    %v165 = vld [vmem:[#allocation2 + $0xb0] sm:$0xff]
    %v166 = vld [vmem:[#allocation2 + $0xb8] sm:$0xff]
    %v167 = vld [vmem:[#allocation2 + $0xc0] sm:$0xff]
    %v168 = vld [vmem:[#allocation2 + $0xc8] sm:$0xff]
    %v169 = vld [vmem:[#allocation2 + $0xd0] sm:$0xff]
    %v170 = vld [vmem:[#allocation2 + $0xd8] sm:$0xff]
    %v171 = vld [vmem:[#allocation2 + $0xe0] sm:$0xff]
    %v172 = vld [vmem:[#allocation2 + $0xe8] sm:$0xff]
    %v173 = vld [vmem:[#allocation2 + $0xf0] sm:$0xff]
    %v174 = vld [vmem:[#allocation2 + $0xf8] sm:$0xff]
    %v175 = vld [vmem:[#allocation3] sm:$0xff]
    %v176 = vld [vmem:[#allocation3 + $0x8] sm:$0xff]
    %v177 = vld [vmem:[#allocation3 + $0x10] sm:$0xff]
    %v178 = vld [vmem:[#allocation3 + $0x18] sm:$0xff]
    %v179 = vld [vmem:[#allocation3 + $0x20] sm:$0xff]
    %v180 = vld [vmem:[#allocation3 + $0x28] sm:$0xff]
    %v181 = vld [vmem:[#allocation3 + $0x30] sm:$0xff]
    %v182 = vld [vmem:[#allocation3 + $0x38] sm:$0xff]
    %v183 = vld [vmem:[#allocation3 + $0x40] sm:$0xff]
    %v184 = vld [vmem:[#allocation3 + $0x48] sm:$0xff]
    %v185 = vld [vmem:[#allocation3 + $0x50] sm:$0xff]
    %v186 = vld [vmem:[#allocation3 + $0x58] sm:$0xff]
    %v187 = vld [vmem:[#allocation3 + $0x60] sm:$0xff]
    %v188 = vld [vmem:[#allocation3 + $0x68] sm:$0xff]
    %v189 = vld [vmem:[#allocation3 + $0x70] sm:$0xff]
    %v190 = vld [vmem:[#allocation3 + $0x78] sm:$0xff]
    %v191 = vld [vmem:[#allocation3 + $0x80] sm:$0xff]
    %v192 = vld [vmem:[#allocation3 + $0x88] sm:$0xff]
    %v193 = vld [vmem:[#allocation3 + $0x90] sm:$0xff]
    %v194 = vld [vmem:[#allocation3 + $0x98] sm:$0xff]
    %v195 = vld [vmem:[#allocation3 + $0xa0] sm:$0xff]
    %v196 = vld [vmem:[#allocation3 + $0xa8] sm:$0xff]
    %v197 = vld [vmem:[#allocation3 + $0xb0] sm:$0xff]
    %v198 = vld [vmem:[#allocation3 + $0xb8] sm:$0xff]
    %v199 = vld [vmem:[#allocation3 + $0xc0] sm:$0xff]
    %v200 = vld [vmem:[#allocation3 + $0xc8] sm:$0xff]
    %v201 = vld [vmem:[#allocation3 + $0xd0] sm:$0xff]
    %v202 = vld [vmem:[#allocation3 + $0xd8] sm:$0xff]
    %v203 = vld [vmem:[#allocation3 + $0xe0] sm:$0xff]
    %v204 = vld [vmem:[#allocation3 + $0xe8] sm:$0xff]
    %v205 = vld [vmem:[#allocation3 + $0xf0] sm:$0xff]
    %v206 = vld [vmem:[#allocation3 + $0xf8] sm:$0xff]
    %v207 = vmul.f32 %v143, %v175
    %v208 = vmul.f32 %v144, %v176
    %v209 = vmul.f32 %v145, %v177
    %v210 = vmul.f32 %v146, %v178
    %v211 = vmul.f32 %v147, %v179
    %v212 = vmul.f32 %v148, %v180
    %v213 = vmul.f32 %v149, %v181
    %v214 = vmul.f32 %v150, %v182
    %v215 = vmul.f32 %v151, %v183
    %v216 = vmul.f32 %v152, %v184
    %v217 = vmul.f32 %v153, %v185
    %v218 = vmul.f32 %v154, %v186
    %v219 = vmul.f32 %v155, %v187
    %v220 = vmul.f32 %v156, %v188
    %v221 = vmul.f32 %v157, %v189
    %v222 = vmul.f32 %v158, %v190
    %v223 = vmul.f32 %v159, %v191
    %v224 = vmul.f32 %v160, %v192
    %v225 = vmul.f32 %v161, %v193
    %v226 = vmul.f32 %v162, %v194
    %v227 = vmul.f32 %v163, %v195
    %v228 = vmul.f32 %v164, %v196
    %v229 = vmul.f32 %v165, %v197
    %v230 = vmul.f32 %v166, %v198
    %v231 = vmul.f32 %v167, %v199
    %v232 = vmul.f32 %v168, %v200
    %v233 = vmul.f32 %v169, %v201
    %v234 = vmul.f32 %v170, %v202
    %v235 = vmul.f32 %v171, %v203
    %v236 = vmul.f32 %v172, %v204
    %v237 = vmul.f32 %v173, %v205
    %v238 = vmul.f32 %v174, %v206
    %vm239 = vcmask 261120
    %v240 = vsel %vm239, %v207, 0.0
    %241 = vadd.xlane.f32.xlu0 %v240
    %v242 = vpop.xlane.xlu0 %241
    %v243 = vsel %vm239, %v208, 0.0
    %244 = vadd.xlane.f32.xlu0 %v243
    %v245 = vpop.xlane.xlu0 %244
    %v246 = vsel %vm239, %v209, 0.0
    %247 = vadd.xlane.f32.xlu0 %v246
    %v248 = vpop.xlane.xlu0 %247
    %v249 = vsel %vm239, %v210, 0.0
    %250 = vadd.xlane.f32.xlu0 %v249
    %v251 = vpop.xlane.xlu0 %250
    %v252 = vsel %vm239, %v211, 0.0
    %253 = vadd.xlane.f32.xlu0 %v252
    %v254 = vpop.xlane.xlu0 %253
    %v255 = vsel %vm239, %v212, 0.0
    %256 = vadd.xlane.f32.xlu0 %v255
    %v257 = vpop.xlane.xlu0 %256
    %v258 = vsel %vm239, %v213, 0.0
    %259 = vadd.xlane.f32.xlu0 %v258
    %v260 = vpop.xlane.xlu0 %259
    %v261 = vsel %vm239, %v214, 0.0
    %262 = vadd.xlane.f32.xlu0 %v261
    %v263 = vpop.xlane.xlu0 %262
    %v264 = vsel %vm239, %v215, 0.0
    %265 = vadd.xlane.f32.xlu0 %v264
    %v266 = vpop.xlane.xlu0 %265
    %v267 = vsel %vm239, %v216, 0.0
    %268 = vadd.xlane.f32.xlu0 %v267
    %v269 = vpop.xlane.xlu0 %268
    %v270 = vsel %vm239, %v217, 0.0
    %271 = vadd.xlane.f32.xlu0 %v270
    %v272 = vpop.xlane.xlu0 %271
    %v273 = vsel %vm239, %v218, 0.0
    %274 = vadd.xlane.f32.xlu0 %v273
    %v275 = vpop.xlane.xlu0 %274
    %v276 = vsel %vm239, %v219, 0.0
    %277 = vadd.xlane.f32.xlu0 %v276
    %v278 = vpop.xlane.xlu0 %277
    %v279 = vsel %vm239, %v220, 0.0
    %280 = vadd.xlane.f32.xlu0 %v279
    %v281 = vpop.xlane.xlu0 %280
    %v282 = vsel %vm239, %v221, 0.0
    %283 = vadd.xlane.f32.xlu0 %v282
    %v284 = vpop.xlane.xlu0 %283
    %v285 = vsel %vm239, %v222, 0.0
    %286 = vadd.xlane.f32.xlu0 %v285
    %v287 = vpop.xlane.xlu0 %286
    %v288 = vsel %vm239, %v223, 0.0
    %289 = vadd.xlane.f32.xlu0 %v288
    %v290 = vpop.xlane.xlu0 %289
    %v291 = vsel %vm239, %v224, 0.0
    %292 = vadd.xlane.f32.xlu0 %v291
    %v293 = vpop.xlane.xlu0 %292
    %v294 = vsel %vm239, %v225, 0.0
    %295 = vadd.xlane.f32.xlu0 %v294
    %v296 = vpop.xlane.xlu0 %295
    %v297 = vsel %vm239, %v226, 0.0
    %298 = vadd.xlane.f32.xlu0 %v297
    %v299 = vpop.xlane.xlu0 %298
    %v300 = vsel %vm239, %v227, 0.0
    %301 = vadd.xlane.f32.xlu0 %v300
    %v302 = vpop.xlane.xlu0 %301
    %v303 = vsel %vm239, %v228, 0.0
    %304 = vadd.xlane.f32.xlu0 %v303
    %v305 = vpop.xlane.xlu0 %304
    %v306 = vsel %vm239, %v229, 0.0
    %307 = vadd.xlane.f32.xlu0 %v306
    %v308 = vpop.xlane.xlu0 %307
    %v309 = vsel %vm239, %v230, 0.0
    %310 = vadd.xlane.f32.xlu0 %v309
    %v311 = vpop.xlane.xlu0 %310
    %v312 = vsel %vm239, %v231, 0.0
    %313 = vadd.xlane.f32.xlu0 %v312
    %v314 = vpop.xlane.xlu0 %313
    %v315 = vsel %vm239, %v232, 0.0
    %316 = vadd.xlane.f32.xlu0 %v315
    %v317 = vpop.xlane.xlu0 %316
    %v318 = vsel %vm239, %v233, 0.0
    %319 = vadd.xlane.f32.xlu0 %v318
    %v320 = vpop.xlane.xlu0 %319
    %v321 = vsel %vm239, %v234, 0.0
    %322 = vadd.xlane.f32.xlu0 %v321
    %v323 = vpop.xlane.xlu0 %322
    %v324 = vsel %vm239, %v235, 0.0
    %325 = vadd.xlane.f32.xlu0 %v324
    %v326 = vpop.xlane.xlu0 %325
    %v327 = vsel %vm239, %v236, 0.0
    %328 = vadd.xlane.f32.xlu0 %v327
    %v329 = vpop.xlane.xlu0 %328
    %v330 = vsel %vm239, %v237, 0.0
    %331 = vadd.xlane.f32.xlu0 %v330
    %v332 = vpop.xlane.xlu0 %331
    %v333 = vsel %vm239, %v238, 0.0
    %334 = vadd.xlane.f32.xlu0 %v333
    %v335 = vpop.xlane.xlu0 %334
    %v336 = vxor.u32 %v242, 2147483648
    %v337 = vxor.u32 %v245, 2147483648
    %v338 = vxor.u32 %v248, 2147483648
    %v339 = vxor.u32 %v251, 2147483648
    %v340 = vxor.u32 %v254, 2147483648
    %v341 = vxor.u32 %v257, 2147483648
    %v342 = vxor.u32 %v260, 2147483648
    %v343 = vxor.u32 %v263, 2147483648
    %v344 = vxor.u32 %v266, 2147483648
    %v345 = vxor.u32 %v269, 2147483648
    %v346 = vxor.u32 %v272, 2147483648
    %v347 = vxor.u32 %v275, 2147483648
    %v348 = vxor.u32 %v278, 2147483648
    %v349 = vxor.u32 %v281, 2147483648
    %v350 = vxor.u32 %v284, 2147483648
    %v351 = vxor.u32 %v287, 2147483648
    %v352 = vxor.u32 %v290, 2147483648
    %v353 = vxor.u32 %v293, 2147483648
    %v354 = vxor.u32 %v296, 2147483648
    %v355 = vxor.u32 %v299, 2147483648
    %v356 = vxor.u32 %v302, 2147483648
    %v357 = vxor.u32 %v305, 2147483648
    %v358 = vxor.u32 %v308, 2147483648
    %v359 = vxor.u32 %v311, 2147483648
    %v360 = vxor.u32 %v314, 2147483648
    %v361 = vxor.u32 %v317, 2147483648
    %v362 = vxor.u32 %v320, 2147483648
    %v363 = vxor.u32 %v323, 2147483648
    %v364 = vxor.u32 %v326, 2147483648
    %v365 = vxor.u32 %v329, 2147483648
    %v366 = vxor.u32 %v332, 2147483648
    %v367 = vxor.u32 %v335, 2147483648
    %v368 = vmul.f32 %v336, 1.442695
    %v369 = vpow.pop %v368
    %v370 = vmul.f32 %v337, 1.442695
    %v371 = vpow.pop %v370
    %v372 = vmul.f32 %v338, 1.442695
    %v373 = vpow.pop %v372
    %v374 = vmul.f32 %v339, 1.442695
    %v375 = vpow.pop %v374
    %v376 = vmul.f32 %v340, 1.442695
    %v377 = vpow.pop %v376
    %v378 = vmul.f32 %v341, 1.442695
    %v379 = vpow.pop %v378
    %v380 = vmul.f32 %v342, 1.442695
    %v381 = vpow.pop %v380
    %v382 = vmul.f32 %v343, 1.442695
    %v383 = vpow.pop %v382
    %v384 = vmul.f32 %v344, 1.442695
    %v385 = vpow.pop %v384
    %v386 = vmul.f32 %v345, 1.442695
    %v387 = vpow.pop %v386
    %v388 = vmul.f32 %v346, 1.442695
    %v389 = vpow.pop %v388
    %v390 = vmul.f32 %v347, 1.442695
    %v391 = vpow.pop %v390
    %v392 = vmul.f32 %v348, 1.442695
    %v393 = vpow.pop %v392
    %v394 = vmul.f32 %v349, 1.442695
    %v395 = vpow.pop %v394
    %v396 = vmul.f32 %v350, 1.442695
    %v397 = vpow.pop %v396
    %v398 = vmul.f32 %v351, 1.442695
    %v399 = vpow.pop %v398
    %v400 = vmul.f32 %v352, 1.442695
    %v401 = vpow.pop %v400
    %v402 = vmul.f32 %v353, 1.442695
    %v403 = vpow.pop %v402
    %v404 = vmul.f32 %v354, 1.442695
    %v405 = vpow.pop %v404
    %v406 = vmul.f32 %v355, 1.442695
    %v407 = vpow.pop %v406
    %v408 = vmul.f32 %v356, 1.442695
    %v409 = vpow.pop %v408
    %v410 = vmul.f32 %v357, 1.442695
    %v411 = vpow.pop %v410
    %v412 = vmul.f32 %v358, 1.442695
    %v413 = vpow.pop %v412
    %v414 = vmul.f32 %v359, 1.442695
    %v415 = vpow.pop %v414
    %v416 = vmul.f32 %v360, 1.442695
    %v417 = vpow.pop %v416
    %v418 = vmul.f32 %v361, 1.442695
    %v419 = vpow.pop %v418
    %v420 = vmul.f32 %v362, 1.442695
    %v421 = vpow.pop %v420
    %v422 = vmul.f32 %v363, 1.442695
    %v423 = vpow.pop %v422
    %v424 = vmul.f32 %v364, 1.442695
    %v425 = vpow.pop %v424
    %v426 = vmul.f32 %v365, 1.442695
    %v427 = vpow.pop %v426
    %v428 = vmul.f32 %v366, 1.442695
    %v429 = vpow.pop %v428
    %v430 = vmul.f32 %v367, 1.442695
    %v431 = vpow.pop %v430
    %v432 = vadd.f32 %v369, 1.0
    %v433 = vadd.f32 %v371, 1.0
    %v434 = vadd.f32 %v373, 1.0
    %v435 = vadd.f32 %v375, 1.0
    %v436 = vadd.f32 %v377, 1.0
    %v437 = vadd.f32 %v379, 1.0
    %v438 = vadd.f32 %v381, 1.0
    %v439 = vadd.f32 %v383, 1.0
    %v440 = vadd.f32 %v385, 1.0
    %v441 = vadd.f32 %v387, 1.0
    %v442 = vadd.f32 %v389, 1.0
    %v443 = vadd.f32 %v391, 1.0
    %v444 = vadd.f32 %v393, 1.0
    %v445 = vadd.f32 %v395, 1.0
    %v446 = vadd.f32 %v397, 1.0
    %v447 = vadd.f32 %v399, 1.0
    %v448 = vadd.f32 %v401, 1.0
    %v449 = vadd.f32 %v403, 1.0
    %v450 = vadd.f32 %v405, 1.0
    %v451 = vadd.f32 %v407, 1.0
    %v452 = vadd.f32 %v409, 1.0
    %v453 = vadd.f32 %v411, 1.0
    %v454 = vadd.f32 %v413, 1.0
    %v455 = vadd.f32 %v415, 1.0
    %v456 = vadd.f32 %v417, 1.0
    %v457 = vadd.f32 %v419, 1.0
    %v458 = vadd.f32 %v421, 1.0
    %v459 = vadd.f32 %v423, 1.0
    %v460 = vadd.f32 %v425, 1.0
    %v461 = vadd.f32 %v427, 1.0
    %v462 = vadd.f32 %v429, 1.0
    %v463 = vadd.f32 %v431, 1.0
    %v464 = vrcp.pop %v432
    %v465 = vmul.f32 1.0, %v464
    %v466 = vrcp.pop %v433
    %v467 = vmul.f32 1.0, %v466
    %v468 = vrcp.pop %v434
    %v469 = vmul.f32 1.0, %v468
    %v470 = vrcp.pop %v435
    %v471 = vmul.f32 1.0, %v470
    %v472 = vrcp.pop %v436
    %v473 = vmul.f32 1.0, %v472
    %v474 = vrcp.pop %v437
    %v475 = vmul.f32 1.0, %v474
    %v476 = vrcp.pop %v438
    %v477 = vmul.f32 1.0, %v476
    %v478 = vrcp.pop %v439
    %v479 = vmul.f32 1.0, %v478
    %v480 = vrcp.pop %v440
    %v481 = vmul.f32 1.0, %v480
    %v482 = vrcp.pop %v441
    %v483 = vmul.f32 1.0, %v482
    %v484 = vrcp.pop %v442
    %v485 = vmul.f32 1.0, %v484
    %v486 = vrcp.pop %v443
    %v487 = vmul.f32 1.0, %v486
    %v488 = vrcp.pop %v444
    %v489 = vmul.f32 1.0, %v488
    %v490 = vrcp.pop %v445
    %v491 = vmul.f32 1.0, %v490
    %v492 = vrcp.pop %v446
    %v493 = vmul.f32 1.0, %v492
    %v494 = vrcp.pop %v447
    %v495 = vmul.f32 1.0, %v494
    %v496 = vrcp.pop %v448
    %v497 = vmul.f32 1.0, %v496
    %v498 = vrcp.pop %v449
    %v499 = vmul.f32 1.0, %v498
    %v500 = vrcp.pop %v450
    %v501 = vmul.f32 1.0, %v500
    %v502 = vrcp.pop %v451
    %v503 = vmul.f32 1.0, %v502
    %v504 = vrcp.pop %v452
    %v505 = vmul.f32 1.0, %v504
    %v506 = vrcp.pop %v453
    %v507 = vmul.f32 1.0, %v506
    %v508 = vrcp.pop %v454
    %v509 = vmul.f32 1.0, %v508
    %v510 = vrcp.pop %v455
    %v511 = vmul.f32 1.0, %v510
    %v512 = vrcp.pop %v456
    %v513 = vmul.f32 1.0, %v512
    %v514 = vrcp.pop %v457
    %v515 = vmul.f32 1.0, %v514
    %v516 = vrcp.pop %v458
    %v517 = vmul.f32 1.0, %v516
    %v518 = vrcp.pop %v459
    %v519 = vmul.f32 1.0, %v518
    %v520 = vrcp.pop %v460
    %v521 = vmul.f32 1.0, %v520
    %v522 = vrcp.pop %v461
    %v523 = vmul.f32 1.0, %v522
    %v524 = vrcp.pop %v462
    %v525 = vmul.f32 1.0, %v524
    %v526 = vrcp.pop %v463
    %v527 = vmul.f32 1.0, %v526
    %v560 = vlaneseq
    %v561 = vand.u32 %v560, 127
    %v562 = vlaneseq
    %v563 = vshrl.u32 %v562, 7
    %v564 = vsub.s32 %v561, %v563
    %v565 = vrot.slane %v465, %v564
    %v566 = vadd.s32 %v561, 4294967288
    %v567 = vlaneseq
    %v568 = vshrl.u32 %v567, 7
    %v569 = vsub.s32 %v566, %v568
    %v570 = vrot.slane %v467, %v569
    %vm571 = vcmask 130112
    %v572 = vsel %vm571, %v570, %v565
    %v573 = vadd.s32 %v561, 4294967280
    %v574 = vlaneseq
    %v575 = vshrl.u32 %v574, 7
    %v576 = vsub.s32 %v573, %v575
    %v577 = vrot.slane %v469, %v576
    %vm578 = vcmask 195712
    %v579 = vsel %vm578, %v577, %v572
    %v580 = vadd.s32 %v561, 4294967272
    %v581 = vlaneseq
    %v582 = vshrl.u32 %v581, 7
    %v583 = vsub.s32 %v580, %v582
    %v584 = vrot.slane %v471, %v583
    %vm585 = vcmask 261312
    %v586 = vsel %vm585, %v584, %v579
    %v587 = vadd.s32 %v561, 4294967264
    %v588 = vlaneseq
    %v589 = vshrl.u32 %v588, 7
    %v590 = vsub.s32 %v587, %v589
    %v591 = vrot.slane %v473, %v590
    %vm592 = vcmask 326912
    %v593 = vsel %vm592, %v591, %v586
    %v594 = vadd.s32 %v561, 4294967256
    %v595 = vlaneseq
    %v596 = vshrl.u32 %v595, 7
    %v597 = vsub.s32 %v594, %v596
    %v598 = vrot.slane %v475, %v597
    %vm599 = vcmask 392512
    %v600 = vsel %vm599, %v598, %v593
    %v601 = vadd.s32 %v561, 4294967248
    %v602 = vlaneseq
    %v603 = vshrl.u32 %v602, 7
    %v604 = vsub.s32 %v601, %v603
    %v605 = vrot.slane %v477, %v604
    %vm606 = vcmask 458112
    %v607 = vsel %vm606, %v605, %v600
    %v608 = vadd.s32 %v561, 4294967240
    %v609 = vlaneseq
    %v610 = vshrl.u32 %v609, 7
    %v611 = vsub.s32 %v608, %v610
    %v612 = vrot.slane %v479, %v611
    %vm613 = vcmask 523712
    %v614 = vsel %vm613, %v612, %v607
    %v615 = vadd.s32 %v561, 4294967232
    %v616 = vlaneseq
    %v617 = vshrl.u32 %v616, 7
    %v618 = vsub.s32 %v615, %v617
    %v619 = vrot.slane %v481, %v618
    %vm620 = vcmask 589312
    %v621 = vsel %vm620, %v619, %v614
    %v622 = vadd.s32 %v561, 4294967224
    %v623 = vlaneseq
    %v624 = vshrl.u32 %v623, 7
    %v625 = vsub.s32 %v622, %v624
    %v626 = vrot.slane %v483, %v625
    %vm627 = vcmask 654912
    %v628 = vsel %vm627, %v626, %v621
    %v629 = vadd.s32 %v561, 4294967216
    %v630 = vlaneseq
    %v631 = vshrl.u32 %v630, 7
    %v632 = vsub.s32 %v629, %v631
    %v633 = vrot.slane %v485, %v632
    %vm634 = vcmask 720512
    %v635 = vsel %vm634, %v633, %v628
    %v636 = vadd.s32 %v561, 4294967208
    %v637 = vlaneseq
    %v638 = vshrl.u32 %v637, 7
    %v639 = vsub.s32 %v636, %v638
    %v640 = vrot.slane %v487, %v639
    %vm641 = vcmask 786112
    %v642 = vsel %vm641, %v640, %v635
    %v643 = vadd.s32 %v561, 4294967200
    %v644 = vlaneseq
    %v645 = vshrl.u32 %v644, 7
    %v646 = vsub.s32 %v643, %v645
    %v647 = vrot.slane %v489, %v646
    %vm648 = vcmask 851712
    %v649 = vsel %vm648, %v647, %v642
    %v650 = vadd.s32 %v561, 4294967192
    %v651 = vlaneseq
    %v652 = vshrl.u32 %v651, 7
    %v653 = vsub.s32 %v650, %v652
    %v654 = vrot.slane %v491, %v653
    %vm655 = vcmask 917312
    %v656 = vsel %vm655, %v654, %v649
    %v657 = vadd.s32 %v561, 4294967184
    %v658 = vlaneseq
    %v659 = vshrl.u32 %v658, 7
    %v660 = vsub.s32 %v657, %v659
    %v661 = vrot.slane %v493, %v660
    %vm662 = vcmask 982912
    %v663 = vsel %vm662, %v661, %v656
    %v664 = vadd.s32 %v561, 4294967176
    %v665 = vlaneseq
    %v666 = vshrl.u32 %v665, 7
    %v667 = vsub.s32 %v664, %v666
    %v668 = vrot.slane %v495, %v667
    %vm669 = vcmask 1048512
    %v670 = vsel %vm669, %v668, %v663
    %v671 = vlaneseq
    %v672 = vshrl.u32 %v671, 7
    %v673 = vsub.s32 %v561, %v672
    %v674 = vrot.slane %v497, %v673
    %v675 = vlaneseq
    %v676 = vshrl.u32 %v675, 7
    %v677 = vsub.s32 %v566, %v676
    %v678 = vrot.slane %v499, %v677
    %v679 = vsel %vm571, %v678, %v674
    %v680 = vlaneseq
    %v681 = vshrl.u32 %v680, 7
    %v682 = vsub.s32 %v573, %v681
    %v683 = vrot.slane %v501, %v682
    %v684 = vsel %vm578, %v683, %v679
    %v685 = vlaneseq
    %v686 = vshrl.u32 %v685, 7
    %v687 = vsub.s32 %v580, %v686
    %v688 = vrot.slane %v503, %v687
    %v689 = vsel %vm585, %v688, %v684
    %v690 = vlaneseq
    %v691 = vshrl.u32 %v690, 7
    %v692 = vsub.s32 %v587, %v691
    %v693 = vrot.slane %v505, %v692
    %v694 = vsel %vm592, %v693, %v689
    %v695 = vlaneseq
    %v696 = vshrl.u32 %v695, 7
    %v697 = vsub.s32 %v594, %v696
    %v698 = vrot.slane %v507, %v697
    %v699 = vsel %vm599, %v698, %v694
    %v700 = vlaneseq
    %v701 = vshrl.u32 %v700, 7
    %v702 = vsub.s32 %v601, %v701
    %v703 = vrot.slane %v509, %v702
    %v704 = vsel %vm606, %v703, %v699
    %v705 = vlaneseq
    %v706 = vshrl.u32 %v705, 7
    %v707 = vsub.s32 %v608, %v706
    %v708 = vrot.slane %v511, %v707
    %v709 = vsel %vm613, %v708, %v704
    %v710 = vlaneseq
    %v711 = vshrl.u32 %v710, 7
    %v712 = vsub.s32 %v615, %v711
    %v713 = vrot.slane %v513, %v712
    %v714 = vsel %vm620, %v713, %v709
    %v715 = vlaneseq
    %v716 = vshrl.u32 %v715, 7
    %v717 = vsub.s32 %v622, %v716
    %v718 = vrot.slane %v515, %v717
    %v719 = vsel %vm627, %v718, %v714
    %v720 = vlaneseq
    %v721 = vshrl.u32 %v720, 7
    %v722 = vsub.s32 %v629, %v721
    %v723 = vrot.slane %v517, %v722
    %v724 = vsel %vm634, %v723, %v719
    %v725 = vlaneseq
    %v726 = vshrl.u32 %v725, 7
    %v727 = vsub.s32 %v636, %v726
    %v728 = vrot.slane %v519, %v727
    %v729 = vsel %vm641, %v728, %v724
    %v730 = vlaneseq
    %v731 = vshrl.u32 %v730, 7
    %v732 = vsub.s32 %v643, %v731
    %v733 = vrot.slane %v521, %v732
    %v734 = vsel %vm648, %v733, %v729
    %v735 = vlaneseq
    %v736 = vshrl.u32 %v735, 7
    %v737 = vsub.s32 %v650, %v736
    %v738 = vrot.slane %v523, %v737
    %v739 = vsel %vm655, %v738, %v734
    %v740 = vlaneseq
    %v741 = vshrl.u32 %v740, 7
    %v742 = vsub.s32 %v657, %v741
    %v743 = vrot.slane %v525, %v742
    %v744 = vsel %vm662, %v743, %v739
    %v745 = vlaneseq
    %v746 = vshrl.u32 %v745, 7
    %v747 = vsub.s32 %v664, %v746
    %v748 = vrot.slane %v527, %v747
    %v749 = vsel %vm669, %v748, %v744
    %vm750 = vcmask 1041409
    %v751 = vsel %vm750, %v749, %v670
    %753 = vst [vmem:[#allocation8] sm:$0x3] %v751
    // Predicated region
    $region76: #{tpu_custom_call.1} parent=1 // pred_check
      _
    $region77: #{tpu_custom_call.1} parent=1 // pred_check_branch
      %755 = sbr.rel (0) target = $region79
    $region78: #{tpu_custom_call.1} parent=1 // pred_region
      %s757 = ssub.s32 32, 32
      %758 = vsyncadd [#allocation9], %s757
      %s760 = sshll.u32 [#allocation8], 4
      %s761 = int_to_ptr.vmem [resolvable:$true] %s760
      %763 = dma.vmem_to_hbm [thread:$0]  %s761, 32, %s4, [#allocation9]
    $region79: #{tpu_custom_call.1} parent=1 // pred_fallthru
      _
    // Predicated region
    $region80: #{tpu_custom_call.1} parent=1 // pred_check
      _
    $region81: #{tpu_custom_call.1} parent=1 // pred_check_branch
      %765 = sbr.rel (0) target = $region83
    $region82: #{tpu_custom_call.1} parent=1 // pred_region
      %766 = dma.done [#allocation9], 32
    $region83: #{tpu_custom_call.1} parent=1 // pred_fallthru
      _
    %767 = vsyncpa [#allocation9], 1
  %768 = vsyncmov [#allocation4]
  %s769 = vpop.sfrf %768
  %p770 = scmp.eq.s32.totalorder %s769, 0
  %p771 = pneg %p770
  %773 = shalt.err (%p771)
  %s774 = scalar_lea.sflag [#allocation4], 1
  %775 = vsyncmov %s774
  %s776 = vpop.sfrf %775
  %p777 = scmp.eq.s32.totalorder %s776, 0
  %p778 = pneg %p777
  %780 = shalt.err (%p778)

</llo_original>
